<compile_context>
chip_gen: v6e
topology: v6e:2x2x1
jax: 0.10.0
libtpu: 0.0.40
codegen_flags: <defaults>
</compile_context>

<pallas_src>
import functools

import jax
import jax.numpy as jnp
from jax.experimental import pallas as pl
from jax.experimental.pallas import tpu as pltpu

_MIN_LANES = 128
_TARGET_BLOCK_BYTES = 2 << 20      # ~2 MiB per block
_MIN_GRID_BLOCKS = 8               # aim for >= 8 grid steps (v7x megacore + deep pipeline)
_VMEM_LIMIT_BYTES = 32 << 20
_MIN_SUBLANES = {4: 8, 2: 16, 1: 32}   # min sublanes of a (sub, 128) tile per itemsize


def _mix_u32(h):
    """splitmix32 finalizer (portable fallback path only)."""
    h = h ^ (h >> 16)
    h = h * jnp.uint32(0x7FEB352D)
    h = h ^ (h >> 15)
    h = h * jnp.uint32(0x846CA68B)
    h = h ^ (h >> 16)
    return h


def _dropout_kernel(seed_ref, x_ref, o_ref, *, rate, use_hw_prng):
    shape = x_ref.shape
    if use_hw_prng:
        # Hardware PRNG, reseeded per block from (seed, block index) so every
        # block draws an independent stream regardless of execution order or
        # megacore sharding.
        pltpu.prng_seed(seed_ref[0], pl.program_id(0))
        raw = pltpu.prng_random_bits(shape)
        bits = raw if raw.dtype == jnp.uint32 else pltpu.bitcast(raw, jnp.uint32)
    else:
        # Portable fallback: one keyed splitmix round over the global element
        # index (counter-based, grid-position aware).
        row = jax.lax.broadcasted_iota(jnp.int32, shape, 0)
        col = jax.lax.broadcasted_iota(jnp.int32, shape, 1)
        row0 = pl.program_id(0) * shape[0]
        idx = ((row0 + row) * shape[1] + col).astype(jnp.uint32)
        key = seed_ref[0].astype(jnp.uint32) * jnp.uint32(0x9E3779B9)
        bits = _mix_u32(idx + key)

    # Keep an element iff bits >= rate * 2^32  =>  P(keep) = 1 - rate.
    threshold = jnp.uint32(min(int(rate * 4294967296.0), 4294967295))
    keep = bits >= threshold

    # Mask-and-scale in the input dtype (exact for f32; single extra rounding
    # for bf16/fp16, negligible for dropout).
    scale = jnp.asarray(1.0 / (1.0 - rate), dtype=x_ref.dtype)
    zero = jnp.zeros((), dtype=x_ref.dtype)
    o_ref[...] = jnp.where(keep, x_ref[...] * scale, zero)


def _choose_block_rows(rows, cols, itemsize):
    min_sub = _MIN_SUBLANES.get(itemsize, 8)
    if rows <= min_sub:
        return rows                                   # one block spanning all rows
    by_bytes = max(min_sub, _TARGET_BLOCK_BYTES // (cols * itemsize))
    by_split = max(min_sub, -(-rows // _MIN_GRID_BLOCKS))   # keep >= ~8 grid steps
    blk = min(rows, by_bytes, by_split)
    if blk < rows:
        blk = max(min_sub, (blk // min_sub) * min_sub)       # dtype-aware tile alignment
    return blk


def _dropout_pallas_2d(x2d, rate, seed):
    rows, cols = x2d.shape
    itemsize = jnp.dtype(x2d.dtype).itemsize
    blk_rows = _choose_block_rows(rows, cols, itemsize)
    grid = (pl.cdiv(rows, blk_rows),)

    use_hw_prng = jax.default_backend() == "tpu"
    kernel = functools.partial(
        _dropout_kernel, rate=float(rate), use_hw_prng=use_hw_prng)
    seed_arr = jnp.asarray([seed], dtype=jnp.int32)
    nbytes = rows * cols * itemsize
    return pl.pallas_call(
        kernel,
        out_shape=jax.ShapeDtypeStruct((rows, cols), x2d.dtype),
        grid_spec=pltpu.PrefetchScalarGridSpec(
            num_scalar_prefetch=1,
            grid=grid,
            in_specs=[pl.BlockSpec((blk_rows, cols), lambda i, seed_ref: (i, 0))],
            out_specs=pl.BlockSpec((blk_rows, cols), lambda i, seed_ref: (i, 0)),
        ),
        compiler_params=pltpu.CompilerParams(
            dimension_semantics=("parallel",),
            vmem_limit_bytes=_VMEM_LIMIT_BYTES,
        ),
        cost_estimate=pl.CostEstimate(
            flops=3 * rows * cols, transcendentals=0, bytes_accessed=2 * nbytes),
    )(seed_arr, x2d)


def controlled_dropout(x, *, p=0.5, training=False, dropout_enabled=False, seed=0):
    """Forward pass of ControlledDropout.

    training=True           -> dropout(rate=p)
    eval + dropout_enabled  -> dropout(rate=0.1)
    eval + disabled         -> identity
    """
    if training:
        rate = float(p)
    elif dropout_enabled:
        rate = 0.1
    else:
        return x
    if rate <= 0.0:
        return x
    if rate >= 1.0:
        # PyTorch F.dropout with p=1 zeroes everything.
        return jnp.zeros_like(x)

    orig_shape = x.shape
    flat = x.reshape(-1)
    n = flat.shape[0]
    if n == 0:
        return x

    # TODO(synk): for unaligned element counts, replace the pad/slice below with
    # in-kernel tail masking (prefetch n, mask the last block) to avoid the two
    # extra HBM passes; aligned inputs (the common case) are already zero-copy.
    n_pad = -(-n // _MIN_LANES) * _MIN_LANES
    padded = n_pad != n
    if padded:
        flat = jnp.pad(flat, (0, n_pad - n))

    # Lane-dense slab: widest lane width in {1024, 512, 256, 128} dividing n_pad.
    cols = _MIN_LANES
    for w in (1024, 512, 256):
        if n_pad % w == 0:
            cols = w
            break
    x2d = flat.reshape(n_pad // cols, cols)

    out = _dropout_pallas_2d(x2d, rate, seed).reshape(-1)
    if padded:
        out = out[:n]
    return out.reshape(orig_shape)


if __name__ == "__main__":
    key = jax.random.PRNGKey(0)
    x = jax.random.normal(key, (2, 4, 16, 16), dtype=jnp.float32)

    # eval, dropout disabled -> identity
    y_eval = jax.block_until_ready(
        controlled_dropout(x, p=0.5, training=False, dropout_enabled=False))
    assert jnp.allclose(y_eval, x), "identity path mismatch"

    # training -> dropout with p=0.5: every element is 0 or x / (1 - p)
    y_train = jax.block_until_ready(
        controlled_dropout(x, p=0.5, training=True, seed=123))
    scaled = x / (1.0 - 0.5)
    ok_train = jnp.all((y_train == 0.0) | (jnp.abs(y_train - scaled) < 1e-5))
    assert bool(ok_train), "training dropout values malformed"
    frac_dropped = float(jnp.mean(y_train == 0.0))
    assert 0.3 < frac_dropped < 0.7, f"drop fraction {frac_dropped} far from p=0.5"

    # eval + MC-dropout enabled -> dropout with rate 0.1
    y_mc = jax.block_until_ready(
        controlled_dropout(x, p=0.5, training=False, dropout_enabled=True, seed=7))
    scaled_mc = x / (1.0 - 0.1)
    ok_mc = jnp.all((y_mc == 0.0) | (jnp.abs(y_mc - scaled_mc) < 1e-5))
    assert bool(ok_mc), "mc-dropout values malformed"

    # odd shape that exercises the minimal-pad / slice path
    x_odd = jax.random.normal(jax.random.PRNGKey(1), (3, 5, 7), dtype=jnp.float32)
    y_odd = jax.block_until_ready(
        controlled_dropout(x_odd, p=0.5, training=True, seed=42))
    scaled_odd = x_odd / 0.5
    ok_odd = jnp.all((y_odd == 0.0) | (jnp.abs(y_odd - scaled_odd) < 1e-5))
    assert bool(ok_odd), "padded-path dropout values malformed"

    print("KERNEL_OK")
</pallas_src>

<mosaic_0001>
module attributes {stable_mosaic.version = 11 : i64} {
  func.func @_dropout_kernel(%arg0: i32, %arg1: memref<1xi32, #tpu.memory_space<smem>>, %arg2: memref<2x1024xf32, #tpu.memory_space<vmem>>, %arg3: memref<2x1024xf32, #tpu.memory_space<vmem>>) attributes {dimension_semantics = [#tpu.dimension_semantics<parallel>], iteration_bounds = array<i64: 1>, scalar_prefetch = 1 : i64, scratch_operands = 0 : i64, tpu.core_type = #tpu.core_type<tc>, window_params = [{transform_indices = @transform_0, window_bounds = array<i64: 2, 1024>}, {transform_indices = @transform_1, window_bounds = array<i64: 2, 1024>}]} {
    %0 = tpu.iota {dimensions = array<i32: 0>} : vector<2x1024xi32>
    %1 = tpu.iota {dimensions = array<i32: 1>} : vector<2x1024xi32>
    %c2_i32 = arith.constant 2 : i32
    %2 = arith.muli %arg0, %c2_i32 : i32
    %3 = vector.broadcast %2 : i32 to vector<2x1024xi32>
    %4 = arith.addi %3, %0 : vector<2x1024xi32>
    %c1024_i32 = arith.constant 1024 : i32
    %5 = vector.broadcast %c1024_i32 : i32 to vector<2x1024xi32>
    %6 = arith.muli %4, %5 : vector<2x1024xi32>
    %7 = arith.addi %6, %1 : vector<2x1024xi32>
    %c0 = arith.constant 0 : index
    %8 = memref.load %arg1[%c0] : memref<1xi32, #tpu.memory_space<smem>>
    %c-1640531527_i32 = arith.constant -1640531527 : i32
    %9 = arith.muli %8, %c-1640531527_i32 : i32
    %10 = vector.broadcast %9 : i32 to vector<2x1024xi32>
    %11 = arith.addi %7, %10 : vector<2x1024xi32>
    %c16_i32 = arith.constant 16 : i32
    %12 = vector.broadcast %c16_i32 : i32 to vector<2x1024xi32>
    %13 = arith.shrui %11, %12 : vector<2x1024xi32>
    %14 = arith.xori %11, %13 : vector<2x1024xi32>
    %c2146121005_i32 = arith.constant 2146121005 : i32
    %15 = vector.broadcast %c2146121005_i32 : i32 to vector<2x1024xi32>
    %16 = arith.muli %14, %15 : vector<2x1024xi32>
    %c15_i32 = arith.constant 15 : i32
    %17 = vector.broadcast %c15_i32 : i32 to vector<2x1024xi32>
    %18 = arith.shrui %16, %17 : vector<2x1024xi32>
    %19 = arith.xori %16, %18 : vector<2x1024xi32>
    %c-2073254261_i32 = arith.constant -2073254261 : i32
    %20 = vector.broadcast %c-2073254261_i32 : i32 to vector<2x1024xi32>
    %21 = arith.muli %19, %20 : vector<2x1024xi32>
    %c16_i32_0 = arith.constant 16 : i32
    %22 = vector.broadcast %c16_i32_0 : i32 to vector<2x1024xi32>
    %23 = arith.shrui %21, %22 : vector<2x1024xi32>
    %24 = arith.xori %21, %23 : vector<2x1024xi32>
    %c-2147483648_i32 = arith.constant -2147483648 : i32
    %25 = vector.broadcast %c-2147483648_i32 : i32 to vector<2x1024xi32>
    %26 = arith.cmpi uge, %24, %25 : vector<2x1024xi32>
    %c0_1 = arith.constant 0 : index
    %c0_2 = arith.constant 0 : index
    %27 = vector.load %arg2[%c0_1, %c0_2] : memref<2x1024xf32, #tpu.memory_space<vmem>>, vector<2x1024xf32>
    %cst = arith.constant 2.000000e+00 : f32
    %28 = vector.broadcast %cst : f32 to vector<2x1024xf32>
    %29 = arith.mulf %27, %28 : vector<2x1024xf32>
    %cst_3 = arith.constant 0.000000e+00 : f32
    %30 = vector.broadcast %cst_3 : f32 to vector<2x1024xf32>
    %31 = arith.select %26, %29, %30 : vector<2x1024xi1>, vector<2x1024xf32>
    %c0_4 = arith.constant 0 : index
    %c0_5 = arith.constant 0 : index
    %32 = vector.load %arg3[%c0_4, %c0_5] : memref<2x1024xf32, #tpu.memory_space<vmem>>, vector<2x1024xf32>
    tpu.vector_store %arg3[%c0_4, %c0_5], %31 {strides = array<i32>} : memref<2x1024xf32, #tpu.memory_space<vmem>>, vector<2x1024xf32>,
    return
  }
  func.func @transform_0(%arg0: i32, %arg1: memref<1xi32, #tpu.memory_space<smem>>) -> (i32, i32) {
    %c0_i32 = arith.constant 0 : i32
    %c0_i32_0 = arith.constant 0 : i32
    return %arg0, %c0_i32 : i32, i32
  }
  func.func @transform_1(%arg0: i32, %arg1: memref<1xi32, #tpu.memory_space<smem>>) -> (i32, i32) {
    %c0_i32 = arith.constant 0 : i32
    %c0_i32_0 = arith.constant 0 : i32
    return %arg0, %c0_i32 : i32, i32
  }
}

</mosaic_0001>

<llo_original>
// kernel: tpu_custom_call.1
$region0: #{tpu_custom_call.1}
  #allocation0 [shape = 'u32[]', space=smem, size = 0x4, offset = 0x4, fixed_abs, tag = 'smem constant byte address 0x4 - core index']
  #allocation1 [shape = 'u32[144,128]{1,0:T(1,128)}', space=vmem, size = 0x12000, scoped, tag = 'internal scratch']
  #allocation2 [shape = 's32[1]{0}', space=sflag, size = 0x4, scoped, tag = 'scoped memory for tpu_custom_call.1']
  #allocation3 [shape = 's32[1]{0:T(128)S(6)}', space=smem, size = 0x200, scoped, tag = 'prefetched SMEM operand 0']
  %s0 = inlined_call_operand.<no memory space> [shape: s32[1], index: 0, kind: input, shape index: {}]
  %s1 = inlined_call_operand.hbm [shape: f32[2,1024], index: 1, kind: input, shape index: {}]
  %s2 = inlined_call_operand.hbm [shape: f32[2,1024], index: 2, kind: output, shape index: {}]
  %s3 = sld [smem:[#allocation0]]
  $region18: #{tpu_custom_call.1} parent=0
    _
  %s5 = ssub.s32 1, %s3
  %s6 = scalar_select 0, %s5, %s3
  %7 = sst [smem:[#allocation3]] %s0
  $region1: #{tpu_custom_call.1} parent=0
    #allocation4 [shape = 'u8[8192]{0}', space=vmem, size = 0x2000, scoped, tag = 'input window, operand 1, single buffered']
    #allocation5 [shape = 's32[1]{0}', space=sflag, size = 0x4, scoped, tag = 'scoped memory for tpu_custom_call.1']
    #allocation6 [shape = 's32[1]{0}', space=sflag, size = 0x4, scoped, tag = 'scoped memory for tpu_custom_call.1']
    #allocation7 [shape = 'u8[8192]{0}', space=vmem, size = 0x2000, scoped, tag = 'output window, operand 0, single buffered']
    %8 = vsyncpa [#allocation5], 0
    %9 = vsyncpa [#allocation6], 0
    // Predicated region
    $region2: #{tpu_custom_call.1} parent=1 // pred_check
      _
    $region3: #{tpu_custom_call.1} parent=1 // pred_check_branch
      %11 = sbr.rel (0) target = $region5
    $region4: #{tpu_custom_call.1} parent=1 // pred_region
      %s13 = ssub.s32 256, 256
      %14 = vsyncadd [#allocation5], %s13
      %s16 = sshll.u32 [#allocation4], 4
      %s17 = int_to_ptr.vmem [resolvable:$true] %s16
      %19 = dma.hbm_to_vmem [thread:$0]  %s1, 256, %s17, [#allocation5]
    $region5: #{tpu_custom_call.1} parent=1 // pred_fallthru
      _
    // Predicated region
    $region6: #{tpu_custom_call.1} parent=1 // pred_check
      _
    $region7: #{tpu_custom_call.1} parent=1 // pred_check_branch
      %21 = sbr.rel (0) target = $region9
    $region8: #{tpu_custom_call.1} parent=1 // pred_region
      %22 = dma.done [#allocation5], 256
    $region9: #{tpu_custom_call.1} parent=1 // pred_fallthru
      _
    %v23 = vlaneseq
    %v24 = vshrl.u32 %v23, 7
    %v25 = vlaneseq
    %v26 = vand.u32 %v25, 127
    %v27 = vadd.s32 %v26, 128
    %v28 = vadd.s32 %v26, 256
    %v29 = vadd.s32 %v26, 384
    %v30 = vadd.s32 %v26, 512
    %v31 = vadd.s32 %v26, 640
    %v32 = vadd.s32 %v26, 768
    %v33 = vadd.s32 %v26, 896
    %s34 = smul.u32 0, 2
    %v35 = vstv %s34
    %v36 = vadd.s32 %v35, %v24
    %v37 = vmul.u32 %v36, 1024
    %v38 = vadd.s32 %v37, %v26
    %v39 = vadd.s32 %v37, %v27
    %v40 = vadd.s32 %v37, %v28
    %v41 = vadd.s32 %v37, %v29
    %v42 = vadd.s32 %v37, %v30
    %v43 = vadd.s32 %v37, %v31
    %v44 = vadd.s32 %v37, %v32
    %v45 = vadd.s32 %v37, %v33
    %s46 = sld [smem:[#allocation3]]
    %s47 = smul.u32 %s46, 2654435769
    %v48 = vstv %s47
    %v49 = vadd.s32 %v38, %v48
    %v50 = vadd.s32 %v39, %v48
    %v51 = vadd.s32 %v40, %v48
    %v52 = vadd.s32 %v41, %v48
    %v53 = vadd.s32 %v42, %v48
    %v54 = vadd.s32 %v43, %v48
    %v55 = vadd.s32 %v44, %v48
    %v56 = vadd.s32 %v45, %v48
    %v57 = vshrl.u32 %v49, 16
    %v58 = vshrl.u32 %v50, 16
    %v59 = vshrl.u32 %v51, 16
    %v60 = vshrl.u32 %v52, 16
    %v61 = vshrl.u32 %v53, 16
    %v62 = vshrl.u32 %v54, 16
    %v63 = vshrl.u32 %v55, 16
    %v64 = vshrl.u32 %v56, 16
    %v65 = vxor.u32 %v49, %v57
    %v66 = vxor.u32 %v50, %v58
    %v67 = vxor.u32 %v51, %v59
    %v68 = vxor.u32 %v52, %v60
    %v69 = vxor.u32 %v53, %v61
    %v70 = vxor.u32 %v54, %v62
    %v71 = vxor.u32 %v55, %v63
    %v72 = vxor.u32 %v56, %v64
    %v73 = vmul.u32 %v65, 2146121005
    %v74 = vmul.u32 %v66, 2146121005
    %v75 = vmul.u32 %v67, 2146121005
    %v76 = vmul.u32 %v68, 2146121005
    %v77 = vmul.u32 %v69, 2146121005
    %v78 = vmul.u32 %v70, 2146121005
    %v79 = vmul.u32 %v71, 2146121005
    %v80 = vmul.u32 %v72, 2146121005
    %v81 = vshrl.u32 %v73, 15
    %v82 = vshrl.u32 %v74, 15
    %v83 = vshrl.u32 %v75, 15
    %v84 = vshrl.u32 %v76, 15
    %v85 = vshrl.u32 %v77, 15
    %v86 = vshrl.u32 %v78, 15
    %v87 = vshrl.u32 %v79, 15
    %v88 = vshrl.u32 %v80, 15
    %v89 = vxor.u32 %v73, %v81
    %v90 = vxor.u32 %v74, %v82
    %v91 = vxor.u32 %v75, %v83
    %v92 = vxor.u32 %v76, %v84
    %v93 = vxor.u32 %v77, %v85
    %v94 = vxor.u32 %v78, %v86
    %v95 = vxor.u32 %v79, %v87
    %v96 = vxor.u32 %v80, %v88
    %v97 = vmul.u32 %v89, 2221713035
    %v98 = vmul.u32 %v90, 2221713035
    %v99 = vmul.u32 %v91, 2221713035
    %v100 = vmul.u32 %v92, 2221713035
    %v101 = vmul.u32 %v93, 2221713035
    %v102 = vmul.u32 %v94, 2221713035
    %v103 = vmul.u32 %v95, 2221713035
    %v104 = vmul.u32 %v96, 2221713035
    %v105 = vshrl.u32 %v97, 16
    %v106 = vshrl.u32 %v98, 16
    %v107 = vshrl.u32 %v99, 16
    %v108 = vshrl.u32 %v100, 16
    %v109 = vshrl.u32 %v101, 16
    %v110 = vshrl.u32 %v102, 16
    %v111 = vshrl.u32 %v103, 16
    %v112 = vshrl.u32 %v104, 16
    %v113 = vxor.u32 %v97, %v105
    %v114 = vxor.u32 %v98, %v106
    %v115 = vxor.u32 %v99, %v107
    %v116 = vxor.u32 %v100, %v108
    %v117 = vxor.u32 %v101, %v109
    %v118 = vxor.u32 %v102, %v110
    %v119 = vxor.u32 %v103, %v111
    %v120 = vxor.u32 %v104, %v112
    %vm121 = vcmp.ge.u32.totalorder %v113, 2147483648
    %vm122 = vcmp.ge.u32.totalorder %v114, 2147483648
    %vm123 = vcmp.ge.u32.totalorder %v115, 2147483648
    %vm124 = vcmp.ge.u32.totalorder %v116, 2147483648
    %vm125 = vcmp.ge.u32.totalorder %v117, 2147483648
    %vm126 = vcmp.ge.u32.totalorder %v118, 2147483648
    %vm127 = vcmp.ge.u32.totalorder %v119, 2147483648
    %vm128 = vcmp.ge.u32.totalorder %v120, 2147483648
    %v129 = vld [vmem:[#allocation4] sm:$0xff]
    %v130 = vld [vmem:[#allocation4 + $0x8] sm:$0xff]
    %v131 = vmul.f32 %v129, 2.0
    %v132 = vmul.f32 %v130, 2.0
    %v135 = vcombine.high %v131, %v131
    %v137 = vunpack.c.l.s4 1983009808
    %v138 = vunpack.c.0.s8 %v137
    %v139 = vlaneseq
    %v140 = vshrl.u32 %v139, 7
    %v141 = vsub.s32 %v138, %v140
    %v142 = vrot.slane %v131, %v141
    %v144 = vunpack.c.l.s4 1983009808
    %v145 = vunpack.c.0.s8 %v144
    %v146 = vlaneseq
    %v147 = vshrl.u32 %v146, 7
    %v148 = vsub.s32 %v145, %v147
    %v149 = vrot.slane %v135, %v148
    %v150 = vcombine.high %v142, %v142
    %v151 = vcombine.high %v149, %v149
    %v152 = vcombine.high %v132, %v132
    %v154 = vunpack.c.l.s4 1983009808
    %v155 = vunpack.c.0.s8 %v154
    %v156 = vlaneseq
    %v157 = vshrl.u32 %v156, 7
    %v158 = vsub.s32 %v155, %v157
    %v159 = vrot.slane %v132, %v158
    %v161 = vunpack.c.l.s4 1983009808
    %v162 = vunpack.c.0.s8 %v161
    %v163 = vlaneseq
    %v164 = vshrl.u32 %v163, 7
    %v165 = vsub.s32 %v162, %v164
    %v166 = vrot.slane %v152, %v165
    %v167 = vcombine.high %v159, %v159
    %v168 = vcombine.high %v166, %v166
    %v177 = vsel %vm121, %v142, 0.0
    %v178 = vsel %vm122, %v150, 0.0
    %v179 = vsel %vm123, %v149, 0.0
    %v180 = vsel %vm124, %v151, 0.0
    %v181 = vsel %vm125, %v159, 0.0
    %v182 = vsel %vm126, %v167, 0.0
    %v183 = vsel %vm127, %v166, 0.0
    %v184 = vsel %vm128, %v168, 0.0
    %v193 = vcombine.low %v177, %v178
    %v194 = vcombine.low %v179, %v180
    %v196 = vunpack.c.l.s4 1983009808
    %v197 = vunpack.c.0.s8 %v196
    %v198 = vlaneseq
    %v199 = vshrl.u32 %v198, 7
    %v200 = vsub.s32 %v197, %v199
    %v201 = vrot.slane %v193, %v200
    %v203 = vunpack.c.l.s4 1983009808
    %v204 = vunpack.c.0.s8 %v203
    %v205 = vlaneseq
    %v206 = vshrl.u32 %v205, 7
    %v207 = vsub.s32 %v204, %v206
    %v208 = vrot.slane %v194, %v207
    %v209 = vcombine.low %v201, %v208
    %v210 = vcombine.low %v181, %v182
    %v211 = vcombine.low %v183, %v184
    %v213 = vunpack.c.l.s4 1983009808
    %v214 = vunpack.c.0.s8 %v213
    %v215 = vlaneseq
    %v216 = vshrl.u32 %v215, 7
    %v217 = vsub.s32 %v214, %v216
    %v218 = vrot.slane %v210, %v217
    %v220 = vunpack.c.l.s4 1983009808
    %v221 = vunpack.c.0.s8 %v220
    %v222 = vlaneseq
    %v223 = vshrl.u32 %v222, 7
    %v224 = vsub.s32 %v221, %v223
    %v225 = vrot.slane %v211, %v224
    %v226 = vcombine.low %v218, %v225
    %229 = vst [vmem:[#allocation7] sm:$0xff] %v209
    %230 = vst [vmem:[#allocation7 + $0x8] sm:$0xff] %v226
    // Predicated region
    $region10: #{tpu_custom_call.1} parent=1 // pred_check
      _
    $region11: #{tpu_custom_call.1} parent=1 // pred_check_branch
      %232 = sbr.rel (0) target = $region13
    $region12: #{tpu_custom_call.1} parent=1 // pred_region
      %s234 = ssub.s32 256, 256
      %235 = vsyncadd [#allocation6], %s234
      %s237 = sshll.u32 [#allocation7], 4
      %s238 = int_to_ptr.vmem [resolvable:$true] %s237
      %240 = dma.vmem_to_hbm [thread:$0]  %s238, 256, %s2, [#allocation6]
    $region13: #{tpu_custom_call.1} parent=1 // pred_fallthru
      _
    // Predicated region
    $region14: #{tpu_custom_call.1} parent=1 // pred_check
      _
    $region15: #{tpu_custom_call.1} parent=1 // pred_check_branch
      %242 = sbr.rel (0) target = $region17
    $region16: #{tpu_custom_call.1} parent=1 // pred_region
      %243 = dma.done [#allocation6], 256
    $region17: #{tpu_custom_call.1} parent=1 // pred_fallthru
      _
    %244 = vsyncpa [#allocation5], 1
    %245 = vsyncpa [#allocation6], 1

</llo_original>
